<compile_context>
chip_gen: v7x
topology: tpu7x:2x2x1
jax: 0.10.0
libtpu: 0.0.40
codegen_flags: <defaults>
</compile_context>

<pallas_src>
import math
from functools import partial

import jax
import jax.numpy as jnp
from jax.experimental import pallas as pl
from jax.experimental.pallas import tpu as pltpu


# ----------------------------------------------------------------------------
# Kernels
# ----------------------------------------------------------------------------
def _pe_add_kernel(x_ref, pe_ref, o_ref):
    # x_ref: (B, tile_s, D)   pe_ref: (tile_s, D)   o_ref: (B, tile_s, D)
    y = x_ref[...].astype(jnp.float32) + pe_ref[...][None, :, :].astype(jnp.float32)
    o_ref[...] = y.astype(o_ref.dtype)


def _pe_add_dropout_kernel(
    x_ref, pe_ref, bits_ref, o_ref, *, keep_threshold_s32, inv_keep
):
    # bits_ref: (B, tile_s, D) int32 — sign-flipped uniform uint32 bits (see wrapper),
    # so a single signed compare implements "uniform >= p" (drop prob = p).
    y = x_ref[...].astype(jnp.float32) + pe_ref[...][None, :, :].astype(jnp.float32)
    keep = bits_ref[...] >= jnp.int32(keep_threshold_s32)     # 1 VALU compare / vreg
    y = jnp.where(keep, y * jnp.float32(inv_keep), jnp.zeros_like(y))
    o_ref[...] = y.astype(o_ref.dtype)


# ----------------------------------------------------------------------------
# Parameter (buffer) construction — matches the PyTorch __init__.
# ----------------------------------------------------------------------------
def make_sinusoidal_pe(d_model, max_len=5000, dtype=jnp.float32):
    position = jnp.arange(0, max_len, dtype=jnp.float32)[:, None]            # (L, 1)
    div_term = jnp.exp(
        jnp.arange(0, d_model, 2, dtype=jnp.float32) * (-math.log(10000.0) / d_model)
    )                                                                         # (D/2,)
    pe = jnp.zeros((max_len, d_model), dtype=jnp.float32)
    pe = pe.at[:, 0::2].set(jnp.sin(position * div_term))
    pe = pe.at[:, 1::2].set(jnp.cos(position * div_term))
    # unsqueeze(0).transpose(0, 1) -> (max_len, 1, d_model)
    return pe[:, None, :].astype(dtype)


# ----------------------------------------------------------------------------
# Wrapper
# ----------------------------------------------------------------------------
def positional_encoding_forward(x, pe, *, p=0.1, training=True, rng_key=None,
                                tile_s=512):
    """x: (S, B, D). pe: (max_len, 1, D). Returns dropout(x + pe[:S]) as (S, B, D)."""
    S, B, D = x.shape

    # Lane-dense presentation: (B, S, D) so the block's minor dims are (tile_s, D).
    x_bsd = jnp.transpose(x, (1, 0, 2))
    pe_sd = pe[:S, 0, :]                                    # (S, D) 2-D slab

    tile_s = int(min(tile_s, S))
    grid = (pl.cdiv(S, tile_s),)

    x_spec = pl.BlockSpec((B, tile_s, D), lambda i: (0, i, 0))
    pe_spec = pl.BlockSpec((tile_s, D), lambda i: (i, 0))
    out_spec = pl.BlockSpec((B, tile_s, D), lambda i: (0, i, 0))
    cparams = pltpu.CompilerParams(dimension_semantics=("parallel",))
    out_shape = jax.ShapeDtypeStruct((B, S, D), x.dtype)

    if training and p > 0.0:
        if rng_key is None:
            rng_key = jax.random.PRNGKey(0)
        # uniform uint32 bits; sign-flip + bitcast so the kernel can use a single
        # signed int32 threshold compare (drop iff bits < round(p * 2^32)).
        bits_u32 = jax.random.bits(rng_key, (B, S, D), dtype=jnp.uint32)
        bits_s32 = jax.lax.bitcast_convert_type(
            bits_u32 ^ jnp.uint32(0x80000000), jnp.int32
        )
        threshold = min(int(round(p * (2 ** 32))), 2 ** 32 - 1)
        threshold_s32 = threshold - 2 ** 31

        kernel = partial(
            _pe_add_dropout_kernel,
            keep_threshold_s32=threshold_s32,
            inv_keep=1.0 / (1.0 - p),
        )
        out_bsd = pl.pallas_call(
            kernel,
            out_shape=out_shape,
            grid=grid,
            in_specs=[x_spec, pe_spec, x_spec],   # bits tiled exactly like x
            out_specs=out_spec,
            compiler_params=cparams,
        )(x_bsd, pe_sd, bits_s32)
    else:
        out_bsd = pl.pallas_call(
            _pe_add_kernel,
            out_shape=out_shape,
            grid=grid,
            in_specs=[x_spec, pe_spec],
            out_specs=out_spec,
            compiler_params=cparams,
        )(x_bsd, pe_sd)

    return jnp.transpose(out_bsd, (1, 0, 2))                 # back to (S, B, D)


if __name__ == "__main__":
    # Small shapes consistent with the module: seq=8, batch=2, d_model=32.
    S, B, D = 8, 2, 32
    P = 0.1
    key = jax.random.PRNGKey(0)
    x = jax.random.normal(key, (S, B, D), dtype=jnp.float32)

    pe = make_sinusoidal_pe(D, max_len=64)                   # deterministic buffer
    ref = x + pe[:S]                                         # (S, B, D) via broadcast

    # 1) Eval mode (dropout = identity): exact semantics vs pure JAX.
    out_eval = positional_encoding_forward(x, pe, p=P, training=False)
    out_eval = jax.block_until_ready(out_eval)
    assert out_eval.shape == (S, B, D)
    assert jnp.allclose(out_eval, ref, atol=1e-6, rtol=1e-6), "eval-mode mismatch"

    # 2) Training mode (inverted dropout, deterministic key).
    out_train = positional_encoding_forward(
        x, pe, p=P, training=True, rng_key=jax.random.PRNGKey(1234)
    )
    out_train = jax.block_until_ready(out_train)
    assert out_train.shape == (S, B, D)
    # Every element must be either dropped (0) or (x + pe) / (1 - p).
    scaled = ref / (1.0 - P)
    ok = jnp.logical_or(
        jnp.isclose(out_train, 0.0, atol=1e-6),
        jnp.isclose(out_train, scaled, atol=1e-5, rtol=1e-5),
    )
    assert bool(jnp.all(ok)), "training-mode dropout values malformed"

    print("KERNEL_OK")
</pallas_src>

<mosaic_0001>
module attributes {stable_mosaic.version = 11 : i64} {
  func.func @_pe_add_kernel(%arg0: i32, %arg1: memref<2x8x32xf32, #tpu.memory_space<vmem>>, %arg2: memref<8x32xf32, #tpu.memory_space<vmem>>, %arg3: memref<2x8x32xf32, #tpu.memory_space<vmem>>) attributes {dimension_semantics = [#tpu.dimension_semantics<parallel>], iteration_bounds = array<i64: 1>, scalar_prefetch = 0 : i64, scratch_operands = 0 : i64, tpu.core_type = #tpu.core_type<tc>, window_params = [{transform_indices = @transform_0, window_bounds = array<i64: 2, 8, 32>}, {transform_indices = @transform_1, window_bounds = array<i64: 8, 32>}, {transform_indices = @transform_2, window_bounds = array<i64: 2, 8, 32>}]} {
    %c0 = arith.constant 0 : index
    %c0_0 = arith.constant 0 : index
    %c0_1 = arith.constant 0 : index
    %0 = vector.load %arg1[%c0, %c0_0, %c0_1] : memref<2x8x32xf32, #tpu.memory_space<vmem>>, vector<2x8x32xf32>
    %c0_2 = arith.constant 0 : index
    %c0_3 = arith.constant 0 : index
    %1 = vector.load %arg2[%c0_2, %c0_3] : memref<8x32xf32, #tpu.memory_space<vmem>>, vector<8x32xf32>
    %2 = vector.shape_cast %1 : vector<8x32xf32> to vector<1x8x32xf32>
    %3 = vector.broadcast %2 : vector<1x8x32xf32> to vector<2x8x32xf32>
    %4 = arith.addf %0, %3 : vector<2x8x32xf32>
    %c0_4 = arith.constant 0 : index
    %c0_5 = arith.constant 0 : index
    %c0_6 = arith.constant 0 : index
    %5 = vector.load %arg3[%c0_4, %c0_5, %c0_6] : memref<2x8x32xf32, #tpu.memory_space<vmem>>, vector<2x8x32xf32>
    tpu.vector_store %arg3[%c0_4, %c0_5, %c0_6], %4 {strides = array<i32>} : memref<2x8x32xf32, #tpu.memory_space<vmem>>, vector<2x8x32xf32>,
    return
  }
  func.func @transform_0(%arg0: i32) -> (i32, i32, i32) {
    %c0_i32 = arith.constant 0 : i32
    %c0_i32_0 = arith.constant 0 : i32
    %c0_i32_1 = arith.constant 0 : i32
    return %c0_i32, %arg0, %c0_i32_0 : i32, i32, i32
  }
  func.func @transform_1(%arg0: i32) -> (i32, i32) {
    %c0_i32 = arith.constant 0 : i32
    %c0_i32_0 = arith.constant 0 : i32
    return %arg0, %c0_i32 : i32, i32
  }
  func.func @transform_2(%arg0: i32) -> (i32, i32, i32) {
    %c0_i32 = arith.constant 0 : i32
    %c0_i32_0 = arith.constant 0 : i32
    %c0_i32_1 = arith.constant 0 : i32
    return %c0_i32, %arg0, %c0_i32_0 : i32, i32, i32
  }
}

</mosaic_0001>

<llo_original>
// kernel: tpu_custom_call.1
$region0: #{tpu_custom_call.1}
  #allocation0 [shape = 'u32[]', space=smem, size = 0x4, offset = 0x4, fixed_abs, tag = 'smem constant byte address 0x4 - core index']
  #allocation1 [shape = 'u32[144,128]{1,0:T(1,128)}', space=vmem, size = 0x12000, scoped, tag = 'internal scratch']
  %s0 = inlined_call_operand.hbm [shape: f32[2,8,32], index: 0, kind: input, shape index: {}]
  %s1 = inlined_call_operand.hbm [shape: f32[8,32], index: 1, kind: input, shape index: {}]
  %s2 = inlined_call_operand.hbm [shape: f32[2,8,32], index: 2, kind: output, shape index: {}]
  %s3 = sld [smem:[#allocation0]]
  $region26: #{tpu_custom_call.1} parent=0
    _
  %s5 = ssub.s32 1, %s3
  %s6 = scalar_select 0, %s5, %s3
  $region1: #{tpu_custom_call.1} parent=0
    #allocation2 [shape = 'u8[8192]{0}', space=vmem, size = 0x2000, scoped, tag = 'input window, operand 0, single buffered']
    #allocation3 [shape = 's32[1]{0}', space=sflag, size = 0x4, scoped, tag = 'scoped memory for tpu_custom_call.1']
    #allocation4 [shape = 's32[1]{0}', space=sflag, size = 0x4, scoped, tag = 'scoped memory for tpu_custom_call.1']
    #allocation5 [shape = 'u8[4096]{0}', space=vmem, size = 0x1000, scoped, tag = 'input window, operand 1, single buffered']
    #allocation6 [shape = 's32[1]{0}', space=sflag, size = 0x4, scoped, tag = 'scoped memory for tpu_custom_call.1']
    #allocation7 [shape = 'u8[8192]{0}', space=vmem, size = 0x2000, scoped, tag = 'output window, operand 0, single buffered']
    %7 = vsyncpa [#allocation3], 0
    %8 = vsyncpa [#allocation6], 0
    %9 = vsyncpa [#allocation4], 0
    // Predicated region
    $region2: #{tpu_custom_call.1} parent=1 // pred_check
      _
    $region3: #{tpu_custom_call.1} parent=1 // pred_check_branch
      %11 = sbr.rel (0) target = $region5
    $region4: #{tpu_custom_call.1} parent=1 // pred_region
      %s13 = ssub.s32 256, 256
      %14 = vsyncadd [#allocation3], %s13
      %s15 = sshll.u32 [#allocation2], 4
      %s16 = int_to_ptr.vmem [resolvable:$true] %s15
      %21 = dma.hbm_to_vmem [thread:$0]  %s0, 256, %s16, [#allocation3], 128, 128, 8
    $region5: #{tpu_custom_call.1} parent=1 // pred_fallthru
      _
    // Predicated region
    $region6: #{tpu_custom_call.1} parent=1 // pred_check
      _
    $region7: #{tpu_custom_call.1} parent=1 // pred_check_branch
      %23 = sbr.rel (0) target = $region9
    $region8: #{tpu_custom_call.1} parent=1 // pred_region
      %s25 = ssub.s32 128, 128
      %26 = vsyncadd [#allocation6], %s25
      %s28 = sshll.u32 [#allocation5], 4
      %s29 = int_to_ptr.vmem [resolvable:$true] %s28
      %31 = dma.hbm_to_vmem [thread:$0]  %s1, 128, %s29, [#allocation6]
    $region9: #{tpu_custom_call.1} parent=1 // pred_fallthru
      _
    // Predicated region
    $region10: #{tpu_custom_call.1} parent=1 // pred_check
      _
    $region11: #{tpu_custom_call.1} parent=1 // pred_check_branch
      %33 = sbr.rel (0) target = $region13
    $region12: #{tpu_custom_call.1} parent=1 // pred_region
      %34 = dma.done [#allocation3], 256
    $region13: #{tpu_custom_call.1} parent=1 // pred_fallthru
      _
    // Predicated region
    $region14: #{tpu_custom_call.1} parent=1 // pred_check
      _
    $region15: #{tpu_custom_call.1} parent=1 // pred_check_branch
      %36 = sbr.rel (0) target = $region17
    $region16: #{tpu_custom_call.1} parent=1 // pred_region
      %37 = dma.done [#allocation6], 128
    $region17: #{tpu_custom_call.1} parent=1 // pred_fallthru
      _
    %v38 = vld [vmem:[#allocation2] sm:$0xff]
    %v39 = vld [vmem:[#allocation2 + $0x8] sm:$0xff]
    %v40 = vld [vmem:[#allocation5] sm:$0xff]
    %v41 = vadd.f32 %v38, %v40
    %v42 = vadd.f32 %v39, %v40
    %vm43 = vcmask 261120
    %44 = vst.msk [vmem:[#allocation7] sm:$0xff] %vm43, %v41
    %45 = vst.msk [vmem:[#allocation7 + $0x8] sm:$0xff] %vm43, %v42
    // Predicated region
    $region18: #{tpu_custom_call.1} parent=1 // pred_check
      _
    $region19: #{tpu_custom_call.1} parent=1 // pred_check_branch
      %47 = sbr.rel (0) target = $region21
    $region20: #{tpu_custom_call.1} parent=1 // pred_region
      %s49 = ssub.s32 256, 256
      %50 = vsyncadd [#allocation4], %s49
      %s51 = sshll.u32 [#allocation7], 4
      %s52 = int_to_ptr.vmem [resolvable:$true] %s51
      %57 = dma.vmem_to_hbm [thread:$0]  %s52, 256, %s2, [#allocation4], 128, 128, 8
    $region21: #{tpu_custom_call.1} parent=1 // pred_fallthru
      _
    // Predicated region
    $region22: #{tpu_custom_call.1} parent=1 // pred_check
      _
    $region23: #{tpu_custom_call.1} parent=1 // pred_check_branch
      %59 = sbr.rel (0) target = $region25
    $region24: #{tpu_custom_call.1} parent=1 // pred_region
      %60 = dma.done [#allocation4], 256
    $region25: #{tpu_custom_call.1} parent=1 // pred_fallthru
      _
    %61 = vsyncpa [#allocation3], 1
    %62 = vsyncpa [#allocation6], 1
    %63 = vsyncpa [#allocation4], 1

</llo_original>
